<compile_context>
chip_gen: v7x
topology: tpu7x:2x2x1
jax: 0.10.0
libtpu: 0.0.40
codegen_flags: <defaults>
</compile_context>

<pallas_src>
import jax
import jax.numpy as jnp
from jax.experimental import pallas as pl
from jax.experimental.pallas import tpu as pltpu

# ---- architecture constants (from the PyTorch module) ----
H1, H2, H3 = 400, 200, 100

_LANE = 128
_MAX_BATCH_TILE = 1024  # multiple of 256 (v6e/v7x MXU rows) and 128 (v5e)


def _round_up(x, m):
    return ((x + m - 1) // m) * m


def _pad2(a, rows, cols):
    r, c = a.shape
    return jnp.pad(a, ((0, rows - r), (0, cols - c)))


def _resident_spec(a):
    # Constant index_map -> the block is never re-fetched across grid steps;
    # single-buffer it so we don't pay for a dead second VMEM copy.
    try:
        return pl.BlockSpec(a.shape, lambda i: (0, 0),
                            pipeline_mode=pl.Buffered(1))
    except TypeError:  # older jax without pipeline_mode kwarg
        return pl.BlockSpec(a.shape, lambda i: (0, 0))


def _pick_batch_tile(B):
    """Sublane/MXU-aligned batch tile; >=2 grid steps for larger batches so the
    'parallel' grid axis can shard across v7x's two TensorCores."""
    b16 = _round_up(B, 16)            # bf16 sublane pack (16 rows / vreg)
    if b16 <= 256:
        return b16                    # tiny batch: one small tile, latency-bound
    tile = _round_up((b16 + 1) // 2, 256)   # ~half the batch, MXU-row aligned
    return min(_MAX_BATCH_TILE, tile)


def _encoder_kernel(x_ref,
                    w1_ref, b1_ref,
                    w2_ref, b2_ref,
                    w3_ref, b3_ref,
                    w4_ref, b4_ref,
                    o_ref):
    # Fully fused 4x (matmul + bias + ReLU).  Weights are small and VMEM-resident;
    # only the batch axis is tiled by the grid.  Matmuls run in the weights' dtype
    # (bf16 on the fast path) with f32 accumulation; bias add / ReLU stay f32
    # (v5e VPU has no bf16 ALU).
    h = x_ref[...]
    for w_ref, b_ref in ((w1_ref, b1_ref), (w2_ref, b2_ref),
                         (w3_ref, b3_ref), (w4_ref, b4_ref)):
        acc = jnp.dot(h.astype(w_ref.dtype), w_ref[...],
                      preferred_element_type=jnp.float32)
        h = jnp.maximum(acc + b_ref[...], 0.0)
    o_ref[...] = h.astype(o_ref.dtype)


def prepare_params(params, compute_dtype=jnp.bfloat16):
    """One-time weight prep: lane-pad hidden/output dims to 128 and cast to the
    MXU compute dtype.  Call once and reuse across forward calls."""
    w1, w2, w3, w4 = params["w1"], params["w2"], params["w3"], params["w4"]
    b1, b2, b3, b4 = params["b1"], params["b2"], params["b3"], params["b4"]

    d_in = w1.shape[0]                        # NOT padded (natural K for layer 1)
    h1_p = _round_up(w1.shape[1], _LANE)      # 400 -> 512
    h2_p = _round_up(w2.shape[1], _LANE)      # 200 -> 256
    h3_p = _round_up(w3.shape[1], _LANE)      # 100 -> 128
    d_out_p = _round_up(w4.shape[1], _LANE)   # e.g. 16 -> 128 (lane-dense store)

    return {
        "w1": _pad2(w1, d_in, h1_p).astype(compute_dtype),
        "w2": _pad2(w2, h1_p, h2_p).astype(compute_dtype),
        "w3": _pad2(w3, h2_p, h3_p).astype(compute_dtype),
        "w4": _pad2(w4, h3_p, d_out_p).astype(compute_dtype),
        "b1": _pad2(b1, 1, h1_p).astype(jnp.float32),
        "b2": _pad2(b2, 1, h2_p).astype(jnp.float32),
        "b3": _pad2(b3, 1, h3_p).astype(jnp.float32),
        "b4": _pad2(b4, 1, d_out_p).astype(jnp.float32),
    }


def encoder_forward(x, prepared, d_out, *, batch_tile=None, out_dtype=None):
    """Fused 4-layer MLP encoder.

    x:        (B, d_in) float32
    prepared: output of prepare_params (padded, compute-dtype weights)
    d_out:    true output width (padded output is sliced back to this)
    """
    w1p, w2p, w3p, w4p = (prepared[k] for k in ("w1", "w2", "w3", "w4"))
    b1p, b2p, b3p, b4p = (prepared[k] for k in ("b1", "b2", "b3", "b4"))
    compute_dtype = w1p.dtype
    if out_dtype is None:
        out_dtype = compute_dtype

    B, d_in = x.shape
    assert w1p.shape[0] == d_in, "prepared params do not match input width"
    d_out_p = w4p.shape[1]

    if batch_tile is None:
        batch_tile = _pick_batch_tile(B)
    else:
        batch_tile = max(16, _round_up(batch_tile, 16))
    B_p = _round_up(B, batch_tile)
    n_steps = B_p // batch_tile

    # Only batch-row padding remains in the wrapper (no d_in column pad).
    # Padded rows compute on zeros and are sliced away -> exact semantics.
    xp = x if B_p == B else jnp.pad(x, ((0, B_p - B), (0, 0)))
    xp = xp.astype(compute_dtype)

    vmem_limit = (32 if batch_tile > 1024 else 24) * 1024 * 1024

    out_p = pl.pallas_call(
        _encoder_kernel,
        out_shape=jax.ShapeDtypeStruct((B_p, d_out_p), out_dtype),
        grid_spec=pl.GridSpec(
            grid=(n_steps,),
            in_specs=[
                # x tile: last dim == full array dim (legal, no 128-pad needed).
                pl.BlockSpec((batch_tile, d_in), lambda i: (i, 0)),
                _resident_spec(w1p), _resident_spec(b1p),
                _resident_spec(w2p), _resident_spec(b2p),
                _resident_spec(w3p), _resident_spec(b3p),
                _resident_spec(w4p), _resident_spec(b4p),
            ],
            out_specs=pl.BlockSpec((batch_tile, d_out_p), lambda i: (i, 0)),
        ),
        compiler_params=pltpu.CompilerParams(
            dimension_semantics=("parallel",),
            vmem_limit_bytes=vmem_limit,
        ),
    )(xp, w1p, b1p, w2p, b2p, w3p, b3p, w4p, b4p)

    # Strip batch / lane padding.
    return out_p[:B, :d_out]


def init_params(key, input_shape, output_shape):
    """Deterministic init matching PyTorch nn.Linear default
    (uniform +/- 1/sqrt(fan_in)).  Weights stored as (in, out); biases (1, out)."""
    dims = [(input_shape, H1), (H1, H2), (H2, H3), (H3, output_shape)]
    params = {}
    for idx, (fan_in, fan_out) in enumerate(dims, start=1):
        key, kw, kb = jax.random.split(key, 3)
        bound = 1.0 / jnp.sqrt(jnp.float32(fan_in))
        params[f"w{idx}"] = jax.random.uniform(
            kw, (fan_in, fan_out), jnp.float32, -bound, bound)
        params[f"b{idx}"] = jax.random.uniform(
            kb, (1, fan_out), jnp.float32, -bound, bound)
    return params


def encoder_ref(x, params):
    h = x
    for idx in range(1, 5):
        h = jnp.maximum(h @ params[f"w{idx}"] + params[f"b{idx}"], 0.0)
    return h


if __name__ == "__main__":
    INPUT_SHAPE = 32     # self.input_shape
    OUTPUT_SHAPE = 16    # self.encoder_out_shape
    BATCH = 8            # tiny batch: latency-bound; real use should batch up

    key = jax.random.PRNGKey(0)
    key, kx = jax.random.split(key)
    x = jax.random.normal(kx, (BATCH, INPUT_SHAPE), jnp.float32)
    params = init_params(key, INPUT_SHAPE, OUTPUT_SHAPE)

    ref = encoder_ref(x, params)

    # 1) f32 compute path: exact structural / padding correctness check.
    prep_f32 = prepare_params(params, compute_dtype=jnp.float32)
    out_f32 = jax.block_until_ready(encoder_forward(x, prep_f32, OUTPUT_SHAPE))
    assert out_f32.shape == (BATCH, OUTPUT_SHAPE)
    assert jnp.allclose(out_f32, ref, atol=1e-5, rtol=1e-5)

    # 2) bf16 MXU fast path with bf16 output store (default).
    prep_bf16 = prepare_params(params)          # hoisted: prepare once, reuse
    out_bf16 = jax.block_until_ready(encoder_forward(x, prep_bf16, OUTPUT_SHAPE))
    assert out_bf16.shape == (BATCH, OUTPUT_SHAPE)
    assert out_bf16.dtype == jnp.bfloat16
    assert jnp.allclose(out_bf16.astype(jnp.float32), ref, atol=5e-2, rtol=5e-2)

    # 3) larger, non-aligned batch: exercises batch-row padding and a 2-step
    #    grid (v7x megacore sharding path), reusing the same prepared weights.
    key, kx2 = jax.random.split(key)
    x_big = jax.random.normal(kx2, (600, INPUT_SHAPE), jnp.float32)
    ref_big = encoder_ref(x_big, params)
    out_big = jax.block_until_ready(
        encoder_forward(x_big, prep_bf16, OUTPUT_SHAPE))
    assert out_big.shape == (600, OUTPUT_SHAPE)
    assert jnp.allclose(out_big.astype(jnp.float32), ref_big,
                        atol=1e-1, rtol=5e-2)

    print("KERNEL_OK")
</pallas_src>

<mosaic_0001>
module attributes {stable_mosaic.version = 11 : i64} {
  func.func @_encoder_kernel(%arg0: i32, %arg1: memref<16x32xf32, #tpu.memory_space<vmem>>, %arg2: memref<32x512xf32, #tpu.memory_space<vmem>>, %arg3: memref<1x512xf32, #tpu.memory_space<vmem>>, %arg4: memref<512x256xf32, #tpu.memory_space<vmem>>, %arg5: memref<1x256xf32, #tpu.memory_space<vmem>>, %arg6: memref<256x128xf32, #tpu.memory_space<vmem>>, %arg7: memref<1x128xf32, #tpu.memory_space<vmem>>, %arg8: memref<128x128xf32, #tpu.memory_space<vmem>>, %arg9: memref<1x128xf32, #tpu.memory_space<vmem>>, %arg10: memref<16x128xf32, #tpu.memory_space<vmem>>) attributes {dimension_semantics = [#tpu.dimension_semantics<parallel>], iteration_bounds = array<i64: 1>, scalar_prefetch = 0 : i64, scratch_operands = 0 : i64, tpu.core_type = #tpu.core_type<tc>, window_params = [{transform_indices = @transform_0, window_bounds = array<i64: 16, 32>}, {pipeline_mode = #tpu.pipeline_mode<synchronous>, transform_indices = @transform_1, window_bounds = array<i64: 32, 512>}, {pipeline_mode = #tpu.pipeline_mode<synchronous>, transform_indices = @transform_2, window_bounds = array<i64: 1, 512>}, {pipeline_mode = #tpu.pipeline_mode<synchronous>, transform_indices = @transform_3, window_bounds = array<i64: 512, 256>}, {pipeline_mode = #tpu.pipeline_mode<synchronous>, transform_indices = @transform_4, window_bounds = array<i64: 1, 256>}, {pipeline_mode = #tpu.pipeline_mode<synchronous>, transform_indices = @transform_5, window_bounds = array<i64: 256, 128>}, {pipeline_mode = #tpu.pipeline_mode<synchronous>, transform_indices = @transform_6, window_bounds = array<i64: 1, 128>}, {pipeline_mode = #tpu.pipeline_mode<synchronous>, transform_indices = @transform_7, window_bounds = array<i64: 128, 128>}, {pipeline_mode = #tpu.pipeline_mode<synchronous>, transform_indices = @transform_8, window_bounds = array<i64: 1, 128>}, {transform_indices = @transform_9, window_bounds = array<i64: 16, 128>}]} {
    %c0 = arith.constant 0 : index
    %c0_0 = arith.constant 0 : index
    %0 = vector.load %arg1[%c0, %c0_0] : memref<16x32xf32, #tpu.memory_space<vmem>>, vector<16x32xf32>
    %c0_1 = arith.constant 0 : index
    %c0_2 = arith.constant 0 : index
    %1 = vector.load %arg2[%c0_1, %c0_2] : memref<32x512xf32, #tpu.memory_space<vmem>>, vector<32x512xf32>
    %cst = arith.constant dense<0.000000e+00> : vector<16x512xf32>
    %2 = tpu.matmul %0, %1, %cst {dimension_numbers = #tpu.dot_dimension_numbers<[1], [0], [0], [1], [0, 0, 1, 1], [], []>} : vector<16x32xf32>, vector<32x512xf32>, vector<16x512xf32> -> vector<16x512xf32>
    %c0_3 = arith.constant 0 : index
    %c0_4 = arith.constant 0 : index
    %3 = vector.load %arg3[%c0_3, %c0_4] : memref<1x512xf32, #tpu.memory_space<vmem>>, vector<1x512xf32>
    %4 = vector.broadcast %3 : vector<1x512xf32> to vector<16x512xf32>
    %5 = arith.addf %2, %4 : vector<16x512xf32>
    %cst_5 = arith.constant 0.000000e+00 : f32
    %6 = vector.broadcast %cst_5 : f32 to vector<16x512xf32>
    %7 = arith.maximumf %5, %6 : vector<16x512xf32>
    %c0_6 = arith.constant 0 : index
    %c0_7 = arith.constant 0 : index
    %8 = vector.load %arg4[%c0_6, %c0_7] : memref<512x256xf32, #tpu.memory_space<vmem>>, vector<512x256xf32>
    %cst_8 = arith.constant dense<0.000000e+00> : vector<16x256xf32>
    %9 = tpu.matmul %7, %8, %cst_8 {dimension_numbers = #tpu.dot_dimension_numbers<[1], [0], [0], [1], [0, 0, 1, 1], [], []>} : vector<16x512xf32>, vector<512x256xf32>, vector<16x256xf32> -> vector<16x256xf32>
    %c0_9 = arith.constant 0 : index
    %c0_10 = arith.constant 0 : index
    %10 = vector.load %arg5[%c0_9, %c0_10] : memref<1x256xf32, #tpu.memory_space<vmem>>, vector<1x256xf32>
    %11 = vector.broadcast %10 : vector<1x256xf32> to vector<16x256xf32>
    %12 = arith.addf %9, %11 : vector<16x256xf32>
    %cst_11 = arith.constant 0.000000e+00 : f32
    %13 = vector.broadcast %cst_11 : f32 to vector<16x256xf32>
    %14 = arith.maximumf %12, %13 : vector<16x256xf32>
    %c0_12 = arith.constant 0 : index
    %c0_13 = arith.constant 0 : index
    %15 = vector.load %arg6[%c0_12, %c0_13] : memref<256x128xf32, #tpu.memory_space<vmem>>, vector<256x128xf32>
    %cst_14 = arith.constant dense<0.000000e+00> : vector<16x128xf32>
    %16 = tpu.matmul %14, %15, %cst_14 {dimension_numbers = #tpu.dot_dimension_numbers<[1], [0], [0], [1], [0, 0, 1, 1], [], []>} : vector<16x256xf32>, vector<256x128xf32>, vector<16x128xf32> -> vector<16x128xf32>
    %c0_15 = arith.constant 0 : index
    %c0_16 = arith.constant 0 : index
    %17 = vector.load %arg7[%c0_15, %c0_16] : memref<1x128xf32, #tpu.memory_space<vmem>>, vector<1x128xf32>
    %18 = vector.broadcast %17 : vector<1x128xf32> to vector<16x128xf32>
    %19 = arith.addf %16, %18 : vector<16x128xf32>
    %cst_17 = arith.constant 0.000000e+00 : f32
    %20 = vector.broadcast %cst_17 : f32 to vector<16x128xf32>
    %21 = arith.maximumf %19, %20 : vector<16x128xf32>
    %c0_18 = arith.constant 0 : index
    %c0_19 = arith.constant 0 : index
    %22 = vector.load %arg8[%c0_18, %c0_19] : memref<128x128xf32, #tpu.memory_space<vmem>>, vector<128x128xf32>
    %cst_20 = arith.constant dense<0.000000e+00> : vector<16x128xf32>
    %23 = tpu.matmul %21, %22, %cst_20 {dimension_numbers = #tpu.dot_dimension_numbers<[1], [0], [0], [1], [0, 0, 1, 1], [], []>} : vector<16x128xf32>, vector<128x128xf32>, vector<16x128xf32> -> vector<16x128xf32>
    %c0_21 = arith.constant 0 : index
    %c0_22 = arith.constant 0 : index
    %24 = vector.load %arg9[%c0_21, %c0_22] : memref<1x128xf32, #tpu.memory_space<vmem>>, vector<1x128xf32>
    %25 = vector.broadcast %24 : vector<1x128xf32> to vector<16x128xf32>
    %26 = arith.addf %23, %25 : vector<16x128xf32>
    %cst_23 = arith.constant 0.000000e+00 : f32
    %27 = vector.broadcast %cst_23 : f32 to vector<16x128xf32>
    %28 = arith.maximumf %26, %27 : vector<16x128xf32>
    %c0_24 = arith.constant 0 : index
    %c0_25 = arith.constant 0 : index
    %29 = vector.load %arg10[%c0_24, %c0_25] : memref<16x128xf32, #tpu.memory_space<vmem>>, vector<16x128xf32>
    tpu.vector_store %arg10[%c0_24, %c0_25], %28 {strides = array<i32>} : memref<16x128xf32, #tpu.memory_space<vmem>>, vector<16x128xf32>,
    return
  }
  func.func @transform_0(%arg0: i32) -> (i32, i32) {
    %c0_i32 = arith.constant 0 : i32
    %c0_i32_0 = arith.constant 0 : i32
    return %arg0, %c0_i32 : i32, i32
  }
  func.func @transform_1(%arg0: i32) -> (i32, i32) {
    %c0_i32 = arith.constant 0 : i32
    %c0_i32_0 = arith.constant 0 : i32
    %c0_i32_1 = arith.constant 0 : i32
    return %c0_i32, %c0_i32_0 : i32, i32
  }
  func.func @transform_2(%arg0: i32) -> (i32, i32) {
    %c0_i32 = arith.constant 0 : i32
    %c0_i32_0 = arith.constant 0 : i32
    %c0_i32_1 = arith.constant 0 : i32
    return %c0_i32, %c0_i32_0 : i32, i32
  }
  func.func @transform_3(%arg0: i32) -> (i32, i32) {
    %c0_i32 = arith.constant 0 : i32
    %c0_i32_0 = arith.constant 0 : i32
    %c0_i32_1 = arith.constant 0 : i32
    return %c0_i32, %c0_i32_0 : i32, i32
  }
  func.func @transform_4(%arg0: i32) -> (i32, i32) {
    %c0_i32 = arith.constant 0 : i32
    %c0_i32_0 = arith.constant 0 : i32
    %c0_i32_1 = arith.constant 0 : i32
    return %c0_i32, %c0_i32_0 : i32, i32
  }
  func.func @transform_5(%arg0: i32) -> (i32, i32) {
    %c0_i32 = arith.constant 0 : i32
    %c0_i32_0 = arith.constant 0 : i32
    %c0_i32_1 = arith.constant 0 : i32
    return %c0_i32, %c0_i32_0 : i32, i32
  }
  func.func @transform_6(%arg0: i32) -> (i32, i32) {
    %c0_i32 = arith.constant 0 : i32
    %c0_i32_0 = arith.constant 0 : i32
    %c0_i32_1 = arith.constant 0 : i32
    return %c0_i32, %c0_i32_0 : i32, i32
  }
  func.func @transform_7(%arg0: i32) -> (i32, i32) {
    %c0_i32 = arith.constant 0 : i32
    %c0_i32_0 = arith.constant 0 : i32
    %c0_i32_1 = arith.constant 0 : i32
    return %c0_i32, %c0_i32_0 : i32, i32
  }
  func.func @transform_8(%arg0: i32) -> (i32, i32) {
    %c0_i32 = arith.constant 0 : i32
    %c0_i32_0 = arith.constant 0 : i32
    %c0_i32_1 = arith.constant 0 : i32
    return %c0_i32, %c0_i32_0 : i32, i32
  }
  func.func @transform_9(%arg0: i32) -> (i32, i32) {
    %c0_i32 = arith.constant 0 : i32
    %c0_i32_0 = arith.constant 0 : i32
    return %arg0, %c0_i32 : i32, i32
  }
}

</mosaic_0001>

<llo_original>
// kernel: tpu_custom_call.1
$region0: #{tpu_custom_call.1}
  #allocation0 [shape = 'u32[]', space=smem, size = 0x4, offset = 0x4, fixed_abs, tag = 'smem constant byte address 0x4 - core index']
  #allocation1 [shape = 'u32[144,128]{1,0:T(1,128)}', space=vmem, size = 0x12000, scoped, tag = 'internal scratch']
  %s0 = inlined_call_operand.hbm [shape: f32[16,32], index: 0, kind: input, shape index: {}]
  %s1 = inlined_call_operand.hbm [shape: f32[32,512], index: 1, kind: input, shape index: {}]
  %s2 = inlined_call_operand.vmem [shape: f32[1,512], index: 2, kind: input, shape index: {}]
  %s3 = inlined_call_operand.hbm [shape: f32[512,256], index: 3, kind: input, shape index: {}]
  %s4 = inlined_call_operand.vmem [shape: f32[1,256], index: 4, kind: input, shape index: {}]
  %s5 = inlined_call_operand.hbm [shape: f32[256,128], index: 5, kind: input, shape index: {}]
  %s6 = inlined_call_operand.vmem [shape: f32[1,128], index: 6, kind: input, shape index: {}]
  %s7 = inlined_call_operand.hbm [shape: f32[128,128], index: 7, kind: input, shape index: {}]
  %s8 = inlined_call_operand.vmem [shape: f32[1,128], index: 8, kind: input, shape index: {}]
  %s9 = inlined_call_operand.hbm [shape: f32[16,128], index: 9, kind: output, shape index: {}]
  %s10 = sld [smem:[#allocation0]]
  $region66: #{tpu_custom_call.1} parent=0
    _
  %s12 = ssub.s32 1, %s10
  %s13 = scalar_select 0, %s12, %s10
  $region1: #{tpu_custom_call.1} parent=0
    #allocation2 [shape = 'u8[8192]{0}', space=vmem, size = 0x2000, scoped, tag = 'input window, operand 0, single buffered']
    #allocation3 [shape = 's32[1]{0}', space=sflag, size = 0x4, scoped, tag = 'scoped memory for tpu_custom_call.1']
    #allocation4 [shape = 's32[1]{0}', space=sflag, size = 0x4, scoped, tag = 'scoped memory for tpu_custom_call.1']
    #allocation5 [shape = 'u8[65536]{0}', space=vmem, size = 0x10000, scoped, tag = 'input window, operand 1, single buffered']
    #allocation6 [shape = 's32[1]{0}', space=sflag, size = 0x4, scoped, tag = 'scoped memory for tpu_custom_call.1']
    #allocation7 [shape = 'u8[524288]{0}', space=vmem, size = 0x80000, scoped, tag = 'input window, operand 3, single buffered']
    #allocation8 [shape = 'u8[131072]{0}', space=vmem, size = 0x20000, scoped, tag = 'input window, operand 5, single buffered']
    #allocation9 [shape = 's32[1]{0}', space=sflag, size = 0x4, scoped, tag = 'scoped memory for tpu_custom_call.1']
    #allocation10 [shape = 'u8[65536]{0}', space=vmem, size = 0x10000, scoped, tag = 'input window, operand 7, single buffered']
    #allocation11 [shape = 'u8[8192]{0}', space=vmem, size = 0x2000, scoped, tag = 'output window, operand 0, single buffered']
    %14 = vsyncpa [#allocation3], 0
    %15 = vsyncpa [#allocation6], 0
    %16 = vsyncpa [#allocation9], 0
    %17 = vsyncpa [#allocation4], 0
    // Predicated region
    $region2: #{tpu_custom_call.1} parent=1 // pred_check
      _
    $region3: #{tpu_custom_call.1} parent=1 // pred_check_branch
      %19 = sbr.rel (0) target = $region5
    $region4: #{tpu_custom_call.1} parent=1 // pred_region
      %s21 = ssub.s32 256, 256
      %22 = vsyncadd [#allocation3], %s21
      %s23 = sshll.u32 [#allocation2], 4
      %s24 = int_to_ptr.vmem [resolvable:$true] %s23
      %29 = dma.hbm_to_vmem [thread:$0]  %s0, 256, %s24, [#allocation3], 128, 128, 8
    $region5: #{tpu_custom_call.1} parent=1 // pred_fallthru
      _
    // Predicated region
    $region6: #{tpu_custom_call.1} parent=1 // pred_check
      _
    $region7: #{tpu_custom_call.1} parent=1 // pred_check_branch
      %31 = sbr.rel (0) target = $region9
    $region8: #{tpu_custom_call.1} parent=1 // pred_region
      %s33 = ssub.s32 2048, 2048
      %34 = vsyncadd [#allocation6], %s33
      %s35 = sshll.u32 [#allocation5], 4
      %s36 = int_to_ptr.vmem [resolvable:$true] %s35
      %41 = dma.hbm_to_vmem [thread:$0]  %s1, 2048, %s36, [#allocation6], 512, 512, 32
    $region9: #{tpu_custom_call.1} parent=1 // pred_fallthru
      _
    // Predicated region
    $region10: #{tpu_custom_call.1} parent=1 // pred_check
      _
    $region11: #{tpu_custom_call.1} parent=1 // pred_check_branch
      %43 = sbr.rel (0) target = $region13
    $region12: #{tpu_custom_call.1} parent=1 // pred_region
      _
    $region13: #{tpu_custom_call.1} parent=1 // pred_fallthru
      _
    // Predicated region
    $region14: #{tpu_custom_call.1} parent=1 // pred_check
      _
    $region15: #{tpu_custom_call.1} parent=1 // pred_check_branch
      %45 = sbr.rel (0) target = $region17
    $region16: #{tpu_custom_call.1} parent=1 // pred_region
      %s47 = ssub.s32 16384, 16384
      %48 = vsyncadd [#allocation6], %s47
      %s49 = sshll.u32 [#allocation7], 4
      %s50 = int_to_ptr.vmem [resolvable:$true] %s49
      %55 = dma.hbm_to_vmem [thread:$0]  %s3, 16384, %s50, [#allocation6], 256, 256, 16
    $region17: #{tpu_custom_call.1} parent=1 // pred_fallthru
      _
    // Predicated region
    $region18: #{tpu_custom_call.1} parent=1 // pred_check
      _
    $region19: #{tpu_custom_call.1} parent=1 // pred_check_branch
      %57 = sbr.rel (0) target = $region21
    $region20: #{tpu_custom_call.1} parent=1 // pred_region
      _
    $region21: #{tpu_custom_call.1} parent=1 // pred_fallthru
      _
    // Predicated region
    $region22: #{tpu_custom_call.1} parent=1 // pred_check
      _
    $region23: #{tpu_custom_call.1} parent=1 // pred_check_branch
      %59 = sbr.rel (0) target = $region25
    $region24: #{tpu_custom_call.1} parent=1 // pred_region
      %s61 = ssub.s32 4096, 4096
      %62 = vsyncadd [#allocation9], %s61
      %s63 = sshll.u32 [#allocation8], 4
      %s64 = int_to_ptr.vmem [resolvable:$true] %s63
      %69 = dma.hbm_to_vmem [thread:$0]  %s5, 4096, %s64, [#allocation9], 128, 128, 8
    $region25: #{tpu_custom_call.1} parent=1 // pred_fallthru
      _
    // Predicated region
    $region26: #{tpu_custom_call.1} parent=1 // pred_check
      _
    $region27: #{tpu_custom_call.1} parent=1 // pred_check_branch
      %71 = sbr.rel (0) target = $region29
    $region28: #{tpu_custom_call.1} parent=1 // pred_region
      _
    $region29: #{tpu_custom_call.1} parent=1 // pred_fallthru
      _
    // Predicated region
    $region30: #{tpu_custom_call.1} parent=1 // pred_check
      _
    $region31: #{tpu_custom_call.1} parent=1 // pred_check_branch
      %73 = sbr.rel (0) target = $region33
    $region32: #{tpu_custom_call.1} parent=1 // pred_region
      %s75 = ssub.s32 2048, 2048
      %76 = vsyncadd [#allocation9], %s75
      %s77 = sshll.u32 [#allocation10], 4
      %s78 = int_to_ptr.vmem [resolvable:$true] %s77
      %83 = dma.hbm_to_vmem [thread:$0]  %s7, 2048, %s78, [#allocation9], 128, 128, 8
    $region33: #{tpu_custom_call.1} parent=1 // pred_fallthru
      _
    // Predicated region
    $region34: #{tpu_custom_call.1} parent=1 // pred_check
      _
    $region35: #{tpu_custom_call.1} parent=1 // pred_check_branch
      %85 = sbr.rel (0) target = $region37
    $region36: #{tpu_custom_call.1} parent=1 // pred_region
      _
    $region37: #{tpu_custom_call.1} parent=1 // pred_fallthru
      _
    // Predicated region
    $region38: #{tpu_custom_call.1} parent=1 // pred_check
      _
    $region39: #{tpu_custom_call.1} parent=1 // pred_check_branch
      %87 = sbr.rel (0) target = $region41
    $region40: #{tpu_custom_call.1} parent=1 // pred_region
      %88 = dma.done [#allocation3], 256
    $region41: #{tpu_custom_call.1} parent=1 // pred_fallthru
      _
    // Predicated region
    $region42: #{tpu_custom_call.1} parent=1 // pred_check
      _
    $region43: #{tpu_custom_call.1} parent=1 // pred_check_branch
      %90 = sbr.rel (0) target = $region45
    $region44: #{tpu_custom_call.1} parent=1 // pred_region
      %91 = dma.done [#allocation6], 2048
    $region45: #{tpu_custom_call.1} parent=1 // pred_fallthru
      _
    // Predicated region
    $region46: #{tpu_custom_call.1} parent=1 // pred_check
      _
    $region47: #{tpu_custom_call.1} parent=1 // pred_check_branch
      %93 = sbr.rel (0) target = $region49
    $region48: #{tpu_custom_call.1} parent=1 // pred_region
      %94 = dma.done [#allocation6], 16384
    $region49: #{tpu_custom_call.1} parent=1 // pred_fallthru
      _
    // Predicated region
    $region50: #{tpu_custom_call.1} parent=1 // pred_check
      _
    $region51: #{tpu_custom_call.1} parent=1 // pred_check_branch
      %96 = sbr.rel (0) target = $region53
    $region52: #{tpu_custom_call.1} parent=1 // pred_region
      %97 = dma.done [#allocation9], 4096
    $region53: #{tpu_custom_call.1} parent=1 // pred_fallthru
      _
    // Predicated region
    $region54: #{tpu_custom_call.1} parent=1 // pred_check
      _
    $region55: #{tpu_custom_call.1} parent=1 // pred_check_branch
      %99 = sbr.rel (0) target = $region57
    $region56: #{tpu_custom_call.1} parent=1 // pred_region
      %100 = dma.done [#allocation9], 2048
    $region57: #{tpu_custom_call.1} parent=1 // pred_fallthru
      _
    %v101 = vld [vmem:[#allocation2] sm:$0xff]
    %v102 = vld [vmem:[#allocation2 + $0x8] sm:$0xff]
    %v103 = vld [vmem:[#allocation5] sm:$0xff]
    %v104 = vld [vmem:[#allocation5 + $0x8] sm:$0xff]
    %v105 = vld [vmem:[#allocation5 + $0x10] sm:$0xff]
    %v106 = vld [vmem:[#allocation5 + $0x18] sm:$0xff]
    %v107 = vld [vmem:[#allocation5 + $0x20] sm:$0xff]
    %v108 = vld [vmem:[#allocation5 + $0x28] sm:$0xff]
    %v109 = vld [vmem:[#allocation5 + $0x30] sm:$0xff]
    %v110 = vld [vmem:[#allocation5 + $0x38] sm:$0xff]
    %v111 = vld [vmem:[#allocation5 + $0x40] sm:$0xff]
    %v112 = vld [vmem:[#allocation5 + $0x48] sm:$0xff]
    %v113 = vld [vmem:[#allocation5 + $0x50] sm:$0xff]
    %v114 = vld [vmem:[#allocation5 + $0x58] sm:$0xff]
    %v115 = vld [vmem:[#allocation5 + $0x60] sm:$0xff]
    %v116 = vld [vmem:[#allocation5 + $0x68] sm:$0xff]
    %v117 = vld [vmem:[#allocation5 + $0x70] sm:$0xff]
    %v118 = vld [vmem:[#allocation5 + $0x78] sm:$0xff]
    %v119 = vld [vmem:[%s2] sm:$0xf]
    %v121 = vlaneseq
    %v122 = vshrl.u32 %v121, 7
    %v123 = vsub.s32 0, %v122
    %v124 = vrot.slane %v119, %v123
    %v125 = vlaneseq
    %v126 = vshrl.u32 %v125, 7
    %v127 = vsub.s32 1, %v126
    %v128 = vrot.slane %v119, %v127
    %v129 = vlaneseq
    %v130 = vshrl.u32 %v129, 7
    %v131 = vsub.s32 2, %v130
    %v132 = vrot.slane %v119, %v131
    %v133 = vlaneseq
    %v134 = vshrl.u32 %v133, 7
    %v135 = vsub.s32 3, %v134
    %v136 = vrot.slane %v119, %v135
    %vm141 = vcmask 261120
    %v143 = vsel %vm141, %v101, 0
    %v146 = vsel %vm141, %v102, 0
    %148 = vmatprep.subr.mxu0 %v104
    %149 = vmatpush1.msra.mxu0 %v103
    %150 = vmatprep.subr.mxu0 %v108
    %151 = vmatpush1.msra.mxu0 %v107
    %152 = vmatprep.subr.mxu0 %v112
    %153 = vmatpush1.msra.mxu0 %v111
    %154 = vmatprep.subr.mxu0 %v116
    %155 = vmatpush1.msra.mxu0 %v115
    %156 = vmatprep.subr.mxu0 0.0
    %157 = vmatpush1.msra.mxu0 0.0
    %158 = vmatprep.subr.mxu0 0.0
    %159 = vmatpush1.msra.mxu0 0.0
    %160 = vmatprep.subr.mxu0 0.0
    %161 = vmatpush1.msra.mxu0 0.0
    %162 = vmatprep.subr.mxu0 0.0
    %163 = vmatpush1.msra.mxu0 0.0
    %164 = vmatprep.subr.mxu0 0.0
    %165 = vmatpush1.msra.mxu0 0.0
    %166 = vmatprep.subr.mxu0 0.0
    %167 = vmatpush1.msra.mxu0 0.0
    %168 = vmatprep.subr.mxu0 0.0
    %169 = vmatpush1.msra.mxu0 0.0
    %170 = vmatprep.subr.mxu0 0.0
    %171 = vmatpush1.msra.mxu0 0.0
    %172 = vmatprep.subr.mxu0 0.0
    %173 = vmatpush1.msra.mxu0 0.0
    %174 = vmatprep.subr.mxu0 0.0
    %175 = vmatpush1.msra.mxu0 0.0
    %176 = vmatprep.subr.mxu0 0.0
    %177 = vmatpush1.msra.mxu0 0.0
    %178 = vmatprep.subr.mxu0 0.0
    %179 = vmatpush1.msra.mxu0 0.0
    %180 = vmatprep.subr.mxu0 0.0
    %181 = vmatpush1.msra.mxu0 0.0
    %182 = vmatprep.subr.mxu0 0.0
    %183 = vmatpush1.msra.mxu0 0.0
    %184 = vmatprep.subr.mxu0 0.0
    %185 = vmatpush1.msra.mxu0 0.0
    %186 = vmatprep.subr.mxu0 0.0
    %187 = vmatpush1.msra.mxu0 0.0
    %188 = vmatprep.subr.mxu0 0.0
    %189 = vmatpush1.msra.mxu0 0.0
    %190 = vmatprep.subr.mxu0 0.0
    %191 = vmatpush1.msra.mxu0 0.0
    %192 = vmatprep.subr.mxu0 0.0
    %193 = vmatpush1.msra.mxu0 0.0
    %194 = vmatprep.subr.mxu0 0.0
    %195 = vmatpush1.msra.mxu0 0.0
    %196 = vmatprep.subr.mxu0 0.0
    %197 = vmatpush1.msra.mxu0 0.0
    %198 = vmatprep.subr.mxu0 0.0
    %199 = vmatpush1.msra.mxu0 0.0
    %200 = vmatprep.subr.mxu0 0.0
    %201 = vmatpush1.msra.mxu0 0.0
    %202 = vmatprep.subr.mxu0 0.0
    %203 = vmatpush1.msra.mxu0 0.0
    %204 = vmatprep.subr.mxu0 0.0
    %205 = vmatpush1.msra.mxu0 0.0
    %206 = vmatprep.subr.mxu0 0.0
    %207 = vmatpush1.msra.mxu0 0.0
    %208 = vmatprep.subr.mxu0 0.0
    %209 = vmatpush1.msra.mxu0 0.0
    %210 = vmatprep.subr.mxu0 0.0
    %211 = vmatpush1.msra.mxu0 0.0
    %212 = vmatprep.mubr.f32.mxu0 0.0
    %213 = vmatmul.mubr.f32.gmra.mrb[0].mxu0 %v143
    %v214 = vpop.f32.mrb[0].mxu0
    %v215 = vadd.f32 %v124, %v214
    %v216 = vpop.f32.mrb[0].mxu0
    %v217 = vadd.f32 %v128, %v216
    %218 = vmatprep.mubr.f32.mxu0 0.0
    %219 = vmatmul.mubr.f32.gmra.mrb[0].mxu0 %v146
    %v220 = vpop.f32.mrb[0].mxu0
    %v221 = vadd.f32 %v124, %v220
    %v222 = vpop.f32.mrb[0].mxu0
    %v223 = vadd.f32 %v128, %v222
    %224 = vdwg.mxu0
    %225 = vmatprep.subr.mxu0 %v106
    %226 = vmatpush1.msra.mxu0 %v105
    %227 = vmatprep.subr.mxu0 %v110
    %228 = vmatpush1.msra.mxu0 %v109
    %229 = vmatprep.subr.mxu0 %v114
    %230 = vmatpush1.msra.mxu0 %v113
    %231 = vmatprep.subr.mxu0 %v118
    %232 = vmatpush1.msra.mxu0 %v117
    %233 = vmatprep.subr.mxu0 0.0
    %234 = vmatpush1.msra.mxu0 0.0
    %235 = vmatprep.subr.mxu0 0.0
    %236 = vmatpush1.msra.mxu0 0.0
    %237 = vmatprep.subr.mxu0 0.0
    %238 = vmatpush1.msra.mxu0 0.0
    %239 = vmatprep.subr.mxu0 0.0
    %240 = vmatpush1.msra.mxu0 0.0
    %241 = vmatprep.subr.mxu0 0.0
    %242 = vmatpush1.msra.mxu0 0.0
    %243 = vmatprep.subr.mxu0 0.0
    %244 = vmatpush1.msra.mxu0 0.0
    %245 = vmatprep.subr.mxu0 0.0
    %246 = vmatpush1.msra.mxu0 0.0
    %247 = vmatprep.subr.mxu0 0.0
    %248 = vmatpush1.msra.mxu0 0.0
    %249 = vmatprep.subr.mxu0 0.0
    %250 = vmatpush1.msra.mxu0 0.0
    %251 = vmatprep.subr.mxu0 0.0
    %252 = vmatpush1.msra.mxu0 0.0
    %253 = vmatprep.subr.mxu0 0.0
    %254 = vmatpush1.msra.mxu0 0.0
    %255 = vmatprep.subr.mxu0 0.0
    %256 = vmatpush1.msra.mxu0 0.0
    %257 = vmatprep.subr.mxu0 0.0
    %258 = vmatpush1.msra.mxu0 0.0
    %259 = vmatprep.subr.mxu0 0.0
    %260 = vmatpush1.msra.mxu0 0.0
    %261 = vmatprep.subr.mxu0 0.0
    %262 = vmatpush1.msra.mxu0 0.0
    %263 = vmatprep.subr.mxu0 0.0
    %264 = vmatpush1.msra.mxu0 0.0
    %265 = vmatprep.subr.mxu0 0.0
    %266 = vmatpush1.msra.mxu0 0.0
    %267 = vmatprep.subr.mxu0 0.0
    %268 = vmatpush1.msra.mxu0 0.0
    %269 = vmatprep.subr.mxu0 0.0
    %270 = vmatpush1.msra.mxu0 0.0
    %271 = vmatprep.subr.mxu0 0.0
    %272 = vmatpush1.msra.mxu0 0.0
    %273 = vmatprep.subr.mxu0 0.0
    %274 = vmatpush1.msra.mxu0 0.0
    %275 = vmatprep.subr.mxu0 0.0
    %276 = vmatpush1.msra.mxu0 0.0
    %277 = vmatprep.subr.mxu0 0.0
    %278 = vmatpush1.msra.mxu0 0.0
    %279 = vmatprep.subr.mxu0 0.0
    %280 = vmatpush1.msra.mxu0 0.0
    %281 = vmatprep.subr.mxu0 0.0
    %282 = vmatpush1.msra.mxu0 0.0
    %283 = vmatprep.subr.mxu0 0.0
    %284 = vmatpush1.msra.mxu0 0.0
    %285 = vmatprep.subr.mxu0 0.0
    %286 = vmatpush1.msra.mxu0 0.0
    %287 = vmatprep.subr.mxu0 0.0
    %288 = vmatpush1.msra.mxu0 0.0
    %289 = vmatprep.mubr.f32.mxu0 0.0
    %290 = vmatmul.mubr.f32.gmra.mrb[0].mxu0 %v143
    %v291 = vpop.f32.mrb[0].mxu0
    %v292 = vadd.f32 %v132, %v291
    %v293 = vpop.f32.mrb[0].mxu0
    %v294 = vadd.f32 %v136, %v293
    %295 = vmatprep.mubr.f32.mxu0 0.0
    %296 = vmatmul.mubr.f32.gmra.mrb[0].mxu0 %v146
    %v297 = vpop.f32.mrb[0].mxu0
    %v298 = vadd.f32 %v132, %v297
    %v299 = vpop.f32.mrb[0].mxu0
    %v300 = vadd.f32 %v136, %v299
    %301 = vdwg.mxu0
    %v302 = vmax.f32 %v215, 0.0
    %v303 = vmax.f32 %v217, 0.0
    %v304 = vmax.f32 %v292, 0.0
    %v305 = vmax.f32 %v294, 0.0
    %v306 = vmax.f32 %v221, 0.0
    %v307 = vmax.f32 %v223, 0.0
    %v308 = vmax.f32 %v298, 0.0
    %v309 = vmax.f32 %v300, 0.0
    %v310 = vld [vmem:[#allocation7] sm:$0xff]
    %v311 = vld [vmem:[#allocation7 + $0x8] sm:$0xff]
    %v312 = vld [vmem:[#allocation7 + $0x10] sm:$0xff]
    %v313 = vld [vmem:[#allocation7 + $0x18] sm:$0xff]
    %v314 = vld [vmem:[#allocation7 + $0x20] sm:$0xff]
    %v315 = vld [vmem:[#allocation7 + $0x28] sm:$0xff]
    %v316 = vld [vmem:[#allocation7 + $0x30] sm:$0xff]
    %v317 = vld [vmem:[#allocation7 + $0x38] sm:$0xff]
    %v318 = vld [vmem:[#allocation7 + $0x40] sm:$0xff]
    %v319 = vld [vmem:[#allocation7 + $0x48] sm:$0xff]
    %v320 = vld [vmem:[#allocation7 + $0x50] sm:$0xff]
    %v321 = vld [vmem:[#allocation7 + $0x58] sm:$0xff]
    %v322 = vld [vmem:[#allocation7 + $0x60] sm:$0xff]
    %v323 = vld [vmem:[#allocation7 + $0x68] sm:$0xff]
    %v324 = vld [vmem:[#allocation7 + $0x70] sm:$0xff]
    %v325 = vld [vmem:[#allocation7 + $0x78] sm:$0xff]
    %v326 = vld [vmem:[#allocation7 + $0x80] sm:$0xff]
    %v327 = vld [vmem:[#allocation7 + $0x88] sm:$0xff]
    %v328 = vld [vmem:[#allocation7 + $0x90] sm:$0xff]
    %v329 = vld [vmem:[#allocation7 + $0x98] sm:$0xff]
    %v330 = vld [vmem:[#allocation7 + $0xa0] sm:$0xff]
    %v331 = vld [vmem:[#allocation7 + $0xa8] sm:$0xff]
    %v332 = vld [vmem:[#allocation7 + $0xb0] sm:$0xff]
    %v333 = vld [vmem:[#allocation7 + $0xb8] sm:$0xff]
    %v334 = vld [vmem:[#allocation7 + $0xc0] sm:$0xff]
    %v335 = vld [vmem:[#allocation7 + $0xc8] sm:$0xff]
    %v336 = vld [vmem:[#allocation7 + $0xd0] sm:$0xff]
    %v337 = vld [vmem:[#allocation7 + $0xd8] sm:$0xff]
    %v338 = vld [vmem:[#allocation7 + $0xe0] sm:$0xff]
    %v339 = vld [vmem:[#allocation7 + $0xe8] sm:$0xff]
    %v340 = vld [vmem:[#allocation7 + $0xf0] sm:$0xff]
    %v341 = vld [vmem:[#allocation7 + $0xf8] sm:$0xff]
    %v342 = vld [vmem:[#allocation7 + $0x100] sm:$0xff]
    %v343 = vld [vmem:[#allocation7 + $0x108] sm:$0xff]
    %v344 = vld [vmem:[#allocation7 + $0x110] sm:$0xff]
    %v345 = vld [vmem:[#allocation7 + $0x118] sm:$0xff]
    %v346 = vld [vmem:[#allocation7 + $0x120] sm:$0xff]
    %v347 = vld [vmem:[#allocation7 + $0x128] sm:$0xff]
    %v348 = vld [vmem:[#allocation7 + $0x130] sm:$0xff]
    %v349 = vld [vmem:[#allocation7 + $0x138] sm:$0xff]
    %v350 = vld [vmem:[#allocation7 + $0x140] sm:$0xff]
    %v351 = vld [vmem:[#allocation7 + $0x148] sm:$0xff]
    %v352 = vld [vmem:[#allocation7 + $0x150] sm:$0xff]
    %v353 = vld [vmem:[#allocation7 + $0x158] sm:$0xff]
    %v354 = vld [vmem:[#allocation7 + $0x160] sm:$0xff]
    %v355 = vld [vmem:[#allocation7 + $0x168] sm:$0xff]
    %v356 = vld [vmem:[#allocation7 + $0x170] sm:$0xff]
    %v357 = vld [vmem:[#allocation7 + $0x178] sm:$0xff]
    %v358 = vld [vmem:[#allocation7 + $0x180] sm:$0xff]
    %v359 = vld [vmem:[#allocation7 + $0x188] sm:$0xff]
    %v360 = vld [vmem:[#allocation7 + $0x190] sm:$0xff]
    %v361 = vld [vmem:[#allocation7 + $0x198] sm:$0xff]
    %v362 = vld [vmem:[#allocation7 + $0x1a0] sm:$0xff]
    %v363 = vld [vmem:[#allocation7 + $0x1a8] sm:$0xff]
    %v364 = vld [vmem:[#allocation7 + $0x1b0] sm:$0xff]
    %v365 = vld [vmem:[#allocation7 + $0x1b8] sm:$0xff]
    %v366 = vld [vmem:[#allocation7 + $0x1c0] sm:$0xff]
    %v367 = vld [vmem:[#allocation7 + $0x1c8] sm:$0xff]
    %v368 = vld [vmem:[#allocation7 + $0x1d0] sm:$0xff]
    %v369 = vld [vmem:[#allocation7 + $0x1d8] sm:$0xff]
    %v370 = vld [vmem:[#allocation7 + $0x1e0] sm:$0xff]
    %v371 = vld [vmem:[#allocation7 + $0x1e8] sm:$0xff]
    %v372 = vld [vmem:[#allocation7 + $0x1f0] sm:$0xff]
    %v373 = vld [vmem:[#allocation7 + $0x1f8] sm:$0xff]
    %v374 = vld [vmem:[#allocation7 + $0x200] sm:$0xff]
    %v375 = vld [vmem:[#allocation7 + $0x208] sm:$0xff]
    %v376 = vld [vmem:[#allocation7 + $0x210] sm:$0xff]
    %v377 = vld [vmem:[#allocation7 + $0x218] sm:$0xff]
    %v378 = vld [vmem:[#allocation7 + $0x220] sm:$0xff]
    %v379 = vld [vmem:[#allocation7 + $0x228] sm:$0xff]
    %v380 = vld [vmem:[#allocation7 + $0x230] sm:$0xff]
    %v381 = vld [vmem:[#allocation7 + $0x238] sm:$0xff]
    %v382 = vld [vmem:[#allocation7 + $0x240] sm:$0xff]
    %v383 = vld [vmem:[#allocation7 + $0x248] sm:$0xff]
    %v384 = vld [vmem:[#allocation7 + $0x250] sm:$0xff]
    %v385 = vld [vmem:[#allocation7 + $0x258] sm:$0xff]
    %v386 = vld [vmem:[#allocation7 + $0x260] sm:$0xff]
    %v387 = vld [vmem:[#allocation7 + $0x268] sm:$0xff]
    %v388 = vld [vmem:[#allocation7 + $0x270] sm:$0xff]
    %v389 = vld [vmem:[#allocation7 + $0x278] sm:$0xff]
    %v390 = vld [vmem:[#allocation7 + $0x280] sm:$0xff]
    %v391 = vld [vmem:[#allocation7 + $0x288] sm:$0xff]
    %v392 = vld [vmem:[#allocation7 + $0x290] sm:$0xff]
    %v393 = vld [vmem:[#allocation7 + $0x298] sm:$0xff]
    %v394 = vld [vmem:[#allocation7 + $0x2a0] sm:$0xff]
    %v395 = vld [vmem:[#allocation7 + $0x2a8] sm:$0xff]
    %v396 = vld [vmem:[#allocation7 + $0x2b0] sm:$0xff]
    %v397 = vld [vmem:[#allocation7 + $0x2b8] sm:$0xff]
    %v398 = vld [vmem:[#allocation7 + $0x2c0] sm:$0xff]
    %v399 = vld [vmem:[#allocation7 + $0x2c8] sm:$0xff]
    %v400 = vld [vmem:[#allocation7 + $0x2d0] sm:$0xff]
    %v401 = vld [vmem:[#allocation7 + $0x2d8] sm:$0xff]
    %v402 = vld [vmem:[#allocation7 + $0x2e0] sm:$0xff]
    %v403 = vld [vmem:[#allocation7 + $0x2e8] sm:$0xff]
    %v404 = vld [vmem:[#allocation7 + $0x2f0] sm:$0xff]
    %v405 = vld [vmem:[#allocation7 + $0x2f8] sm:$0xff]
    %v406 = vld [vmem:[#allocation7 + $0x300] sm:$0xff]
    %v407 = vld [vmem:[#allocation7 + $0x308] sm:$0xff]
    %v408 = vld [vmem:[#allocation7 + $0x310] sm:$0xff]
    %v409 = vld [vmem:[#allocation7 + $0x318] sm:$0xff]
    %v410 = vld [vmem:[#allocation7 + $0x320] sm:$0xff]
    %v411 = vld [vmem:[#allocation7 + $0x328] sm:$0xff]
    %v412 = vld [vmem:[#allocation7 + $0x330] sm:$0xff]
    %v413 = vld [vmem:[#allocation7 + $0x338] sm:$0xff]
    %v414 = vld [vmem:[#allocation7 + $0x340] sm:$0xff]
    %v415 = vld [vmem:[#allocation7 + $0x348] sm:$0xff]
    %v416 = vld [vmem:[#allocation7 + $0x350] sm:$0xff]
    %v417 = vld [vmem:[#allocation7 + $0x358] sm:$0xff]
    %v418 = vld [vmem:[#allocation7 + $0x360] sm:$0xff]
    %v419 = vld [vmem:[#allocation7 + $0x368] sm:$0xff]
    %v420 = vld [vmem:[#allocation7 + $0x370] sm:$0xff]
    %v421 = vld [vmem:[#allocation7 + $0x378] sm:$0xff]
    %v422 = vld [vmem:[#allocation7 + $0x380] sm:$0xff]
    %v423 = vld [vmem:[#allocation7 + $0x388] sm:$0xff]
    %v424 = vld [vmem:[#allocation7 + $0x390] sm:$0xff]
    %v425 = vld [vmem:[#allocation7 + $0x398] sm:$0xff]
    %v426 = vld [vmem:[#allocation7 + $0x3a0] sm:$0xff]
    %v427 = vld [vmem:[#allocation7 + $0x3a8] sm:$0xff]
    %v428 = vld [vmem:[#allocation7 + $0x3b0] sm:$0xff]
    %v429 = vld [vmem:[#allocation7 + $0x3b8] sm:$0xff]
    %v430 = vld [vmem:[#allocation7 + $0x3c0] sm:$0xff]
    %v431 = vld [vmem:[#allocation7 + $0x3c8] sm:$0xff]
    %v432 = vld [vmem:[#allocation7 + $0x3d0] sm:$0xff]
    %v433 = vld [vmem:[#allocation7 + $0x3d8] sm:$0xff]
    %v434 = vld [vmem:[#allocation7 + $0x3e0] sm:$0xff]
    %v435 = vld [vmem:[#allocation7 + $0x3e8] sm:$0xff]
    %v436 = vld [vmem:[#allocation7 + $0x3f0] sm:$0xff]
    %v437 = vld [vmem:[#allocation7 + $0x3f8] sm:$0xff]
    %v438 = vld [vmem:[%s4] sm:$0x3]
    %v440 = vlaneseq
    %v441 = vshrl.u32 %v440, 7
    %v442 = vsub.s32 0, %v441
    %v443 = vrot.slane %v438, %v442
    %v444 = vlaneseq
    %v445 = vshrl.u32 %v444, 7
    %v446 = vsub.s32 1, %v445
    %v447 = vrot.slane %v438, %v446
    %450 = vmatprep.subr.mxu0 %v311
    %451 = vmatpush1.msra.mxu0 %v310
    %452 = vmatprep.subr.mxu0 %v313
    %453 = vmatpush1.msra.mxu0 %v312
    %454 = vmatprep.subr.mxu0 %v315
    %455 = vmatpush1.msra.mxu0 %v314
    %456 = vmatprep.subr.mxu0 %v317
    %457 = vmatpush1.msra.mxu0 %v316
    %458 = vmatprep.subr.mxu0 %v319
    %459 = vmatpush1.msra.mxu0 %v318
    %460 = vmatprep.subr.mxu0 %v321
    %461 = vmatpush1.msra.mxu0 %v320
    %462 = vmatprep.subr.mxu0 %v323
    %463 = vmatpush1.msra.mxu0 %v322
    %464 = vmatprep.subr.mxu0 %v325
    %465 = vmatpush1.msra.mxu0 %v324
    %466 = vmatprep.subr.mxu0 %v327
    %467 = vmatpush1.msra.mxu0 %v326
    %468 = vmatprep.subr.mxu0 %v329
    %469 = vmatpush1.msra.mxu0 %v328
    %470 = vmatprep.subr.mxu0 %v331
    %471 = vmatpush1.msra.mxu0 %v330
    %472 = vmatprep.subr.mxu0 %v333
    %473 = vmatpush1.msra.mxu0 %v332
    %474 = vmatprep.subr.mxu0 %v335
    %475 = vmatpush1.msra.mxu0 %v334
    %476 = vmatprep.subr.mxu0 %v337
    %477 = vmatpush1.msra.mxu0 %v336
    %478 = vmatprep.subr.mxu0 %v339
    %479 = vmatpush1.msra.mxu0 %v338
    %480 = vmatprep.subr.mxu0 %v341
    %481 = vmatpush1.msra.mxu0 %v340
    %482 = vmatprep.subr.mxu0 %v343
    %483 = vmatpush1.msra.mxu0 %v342
    %484 = vmatprep.subr.mxu0 %v345
    %485 = vmatpush1.msra.mxu0 %v344
    %486 = vmatprep.subr.mxu0 %v347
    %487 = vmatpush1.msra.mxu0 %v346
    %488 = vmatprep.subr.mxu0 %v349
    %489 = vmatpush1.msra.mxu0 %v348
    %490 = vmatprep.subr.mxu0 %v351
    %491 = vmatpush1.msra.mxu0 %v350
    %492 = vmatprep.subr.mxu0 %v353
    %493 = vmatpush1.msra.mxu0 %v352
    %494 = vmatprep.subr.mxu0 %v355
    %495 = vmatpush1.msra.mxu0 %v354
    %496 = vmatprep.subr.mxu0 %v357
    %497 = vmatpush1.msra.mxu0 %v356
    %498 = vmatprep.subr.mxu0 %v359
    %499 = vmatpush1.msra.mxu0 %v358
    %500 = vmatprep.subr.mxu0 %v361
    %501 = vmatpush1.msra.mxu0 %v360
    %502 = vmatprep.subr.mxu0 %v363
    %503 = vmatpush1.msra.mxu0 %v362
    %504 = vmatprep.subr.mxu0 %v365
    %505 = vmatpush1.msra.mxu0 %v364
    %506 = vmatprep.subr.mxu0 %v367
    %507 = vmatpush1.msra.mxu0 %v366
    %508 = vmatprep.subr.mxu0 %v369
    %509 = vmatpush1.msra.mxu0 %v368
    %510 = vmatprep.subr.mxu0 %v371
    %511 = vmatpush1.msra.mxu0 %v370
    %512 = vmatprep.subr.mxu0 %v373
    %513 = vmatpush1.msra.mxu0 %v372
    %514 = vmatprep.mubr.f32.mxu0 %v303
    %515 = vmatmul.mubr.f32.gmra.mrb[0].mxu0 %v302
    %v516 = vpop.f32.mrb[0].mxu0
    %v517 = vadd.f32 %v443, %v516
    %v518 = vpop.f32.mrb[0].mxu0
    %v519 = vadd.f32 %v447, %v518
    %520 = vmatprep.mubr.f32.mxu0 %v307
    %521 = vmatmul.mubr.f32.gmra.mrb[0].mxu0 %v306
    %v522 = vpop.f32.mrb[0].mxu0
    %v523 = vadd.f32 %v443, %v522
    %v524 = vpop.f32.mrb[0].mxu0
    %v525 = vadd.f32 %v447, %v524
    %526 = vdwg.mxu0
    %527 = vmatprep.subr.mxu0 %v375
    %528 = vmatpush1.msra.mxu0 %v374
    %529 = vmatprep.subr.mxu0 %v377
    %530 = vmatpush1.msra.mxu0 %v376
    %531 = vmatprep.subr.mxu0 %v379
    %532 = vmatpush1.msra.mxu0 %v378
    %533 = vmatprep.subr.mxu0 %v381
    %534 = vmatpush1.msra.mxu0 %v380
    %535 = vmatprep.subr.mxu0 %v383
    %536 = vmatpush1.msra.mxu0 %v382
    %537 = vmatprep.subr.mxu0 %v385
    %538 = vmatpush1.msra.mxu0 %v384
    %539 = vmatprep.subr.mxu0 %v387
    %540 = vmatpush1.msra.mxu0 %v386
    %541 = vmatprep.subr.mxu0 %v389
    %542 = vmatpush1.msra.mxu0 %v388
    %543 = vmatprep.subr.mxu0 %v391
    %544 = vmatpush1.msra.mxu0 %v390
    %545 = vmatprep.subr.mxu0 %v393
    %546 = vmatpush1.msra.mxu0 %v392
    %547 = vmatprep.subr.mxu0 %v395
    %548 = vmatpush1.msra.mxu0 %v394
    %549 = vmatprep.subr.mxu0 %v397
    %550 = vmatpush1.msra.mxu0 %v396
    %551 = vmatprep.subr.mxu0 %v399
    %552 = vmatpush1.msra.mxu0 %v398
    %553 = vmatprep.subr.mxu0 %v401
    %554 = vmatpush1.msra.mxu0 %v400
    %555 = vmatprep.subr.mxu0 %v403
    %556 = vmatpush1.msra.mxu0 %v402
    %557 = vmatprep.subr.mxu0 %v405
    %558 = vmatpush1.msra.mxu0 %v404
    %559 = vmatprep.subr.mxu0 %v407
    %560 = vmatpush1.msra.mxu0 %v406
    %561 = vmatprep.subr.mxu0 %v409
    %562 = vmatpush1.msra.mxu0 %v408
    %563 = vmatprep.subr.mxu0 %v411
    %564 = vmatpush1.msra.mxu0 %v410
    %565 = vmatprep.subr.mxu0 %v413
    %566 = vmatpush1.msra.mxu0 %v412
    %567 = vmatprep.subr.mxu0 %v415
    %568 = vmatpush1.msra.mxu0 %v414
    %569 = vmatprep.subr.mxu0 %v417
    %570 = vmatpush1.msra.mxu0 %v416
    %571 = vmatprep.subr.mxu0 %v419
    %572 = vmatpush1.msra.mxu0 %v418
    %573 = vmatprep.subr.mxu0 %v421
    %574 = vmatpush1.msra.mxu0 %v420
    %575 = vmatprep.subr.mxu0 %v423
    %576 = vmatpush1.msra.mxu0 %v422
    %577 = vmatprep.subr.mxu0 %v425
    %578 = vmatpush1.msra.mxu0 %v424
    %579 = vmatprep.subr.mxu0 %v427
    %580 = vmatpush1.msra.mxu0 %v426
    %581 = vmatprep.subr.mxu0 %v429
    %582 = vmatpush1.msra.mxu0 %v428
    %583 = vmatprep.subr.mxu0 %v431
    %584 = vmatpush1.msra.mxu0 %v430
    %585 = vmatprep.subr.mxu0 %v433
    %586 = vmatpush1.msra.mxu0 %v432
    %587 = vmatprep.subr.mxu0 %v435
    %588 = vmatpush1.msra.mxu0 %v434
    %589 = vmatprep.subr.mxu0 %v437
    %590 = vmatpush1.msra.mxu0 %v436
    %591 = vmatprep.mubr.f32.mxu0 %v305
    %592 = vmatmul.mubr.f32.gmra.mrb[0].mxu0 %v304
    %v593 = vpop.f32.mrb[0].mxu0
    %v594 = vadd.f32 %v517, %v593
    %v595 = vpop.f32.mrb[0].mxu0
    %v596 = vadd.f32 %v519, %v595
    %597 = vmatprep.mubr.f32.mxu0 %v309
    %598 = vmatmul.mubr.f32.gmra.mrb[0].mxu0 %v308
    %v599 = vpop.f32.mrb[0].mxu0
    %v600 = vadd.f32 %v523, %v599
    %v601 = vpop.f32.mrb[0].mxu0
    %v602 = vadd.f32 %v525, %v601
    %603 = vdwg.mxu0
    %v604 = vmax.f32 %v594, 0.0
    %v605 = vmax.f32 %v596, 0.0
    %v606 = vmax.f32 %v600, 0.0
    %v607 = vmax.f32 %v602, 0.0
    %v608 = vld [vmem:[#allocation8] sm:$0xff]
    %v609 = vld [vmem:[#allocation8 + $0x8] sm:$0xff]
    %v610 = vld [vmem:[#allocation8 + $0x10] sm:$0xff]
    %v611 = vld [vmem:[#allocation8 + $0x18] sm:$0xff]
    %v612 = vld [vmem:[#allocation8 + $0x20] sm:$0xff]
    %v613 = vld [vmem:[#allocation8 + $0x28] sm:$0xff]
    %v614 = vld [vmem:[#allocation8 + $0x30] sm:$0xff]
    %v615 = vld [vmem:[#allocation8 + $0x38] sm:$0xff]
    %v616 = vld [vmem:[#allocation8 + $0x40] sm:$0xff]
    %v617 = vld [vmem:[#allocation8 + $0x48] sm:$0xff]
    %v618 = vld [vmem:[#allocation8 + $0x50] sm:$0xff]
    %v619 = vld [vmem:[#allocation8 + $0x58] sm:$0xff]
    %v620 = vld [vmem:[#allocation8 + $0x60] sm:$0xff]
    %v621 = vld [vmem:[#allocation8 + $0x68] sm:$0xff]
    %v622 = vld [vmem:[#allocation8 + $0x70] sm:$0xff]
    %v623 = vld [vmem:[#allocation8 + $0x78] sm:$0xff]
    %v624 = vld [vmem:[#allocation8 + $0x80] sm:$0xff]
    %v625 = vld [vmem:[#allocation8 + $0x88] sm:$0xff]
    %v626 = vld [vmem:[#allocation8 + $0x90] sm:$0xff]
    %v627 = vld [vmem:[#allocation8 + $0x98] sm:$0xff]
    %v628 = vld [vmem:[#allocation8 + $0xa0] sm:$0xff]
    %v629 = vld [vmem:[#allocation8 + $0xa8] sm:$0xff]
    %v630 = vld [vmem:[#allocation8 + $0xb0] sm:$0xff]
    %v631 = vld [vmem:[#allocation8 + $0xb8] sm:$0xff]
    %v632 = vld [vmem:[#allocation8 + $0xc0] sm:$0xff]
    %v633 = vld [vmem:[#allocation8 + $0xc8] sm:$0xff]
    %v634 = vld [vmem:[#allocation8 + $0xd0] sm:$0xff]
    %v635 = vld [vmem:[#allocation8 + $0xd8] sm:$0xff]
    %v636 = vld [vmem:[#allocation8 + $0xe0] sm:$0xff]
    %v637 = vld [vmem:[#allocation8 + $0xe8] sm:$0xff]
    %v638 = vld [vmem:[#allocation8 + $0xf0] sm:$0xff]
    %v639 = vld [vmem:[#allocation8 + $0xf8] sm:$0xff]
    %v640 = vld [vmem:[%s6] sm:$0x1]
    %v642 = vlaneseq
    %v643 = vshrl.u32 %v642, 7
    %v644 = vsub.s32 0, %v643
    %v645 = vrot.slane %v640, %v644
    %647 = vmatprep.subr.mxu0 0.0
    %648 = vmatpush1.msra.mxu0 %v608
    %649 = vmatprep.subr.mxu0 0.0
    %650 = vmatpush1.msra.mxu0 %v609
    %651 = vmatprep.subr.mxu0 0.0
    %652 = vmatpush1.msra.mxu0 %v610
    %653 = vmatprep.subr.mxu0 0.0
    %654 = vmatpush1.msra.mxu0 %v611
    %655 = vmatprep.subr.mxu0 0.0
    %656 = vmatpush1.msra.mxu0 %v612
    %657 = vmatprep.subr.mxu0 0.0
    %658 = vmatpush1.msra.mxu0 %v613
    %659 = vmatprep.subr.mxu0 0.0
    %660 = vmatpush1.msra.mxu0 %v614
    %661 = vmatprep.subr.mxu0 0.0
    %662 = vmatpush1.msra.mxu0 %v615
    %663 = vmatprep.subr.mxu0 0.0
    %664 = vmatpush1.msra.mxu0 %v616
    %665 = vmatprep.subr.mxu0 0.0
    %666 = vmatpush1.msra.mxu0 %v617
    %667 = vmatprep.subr.mxu0 0.0
    %668 = vmatpush1.msra.mxu0 %v618
    %669 = vmatprep.subr.mxu0 0.0
    %670 = vmatpush1.msra.mxu0 %v619
    %671 = vmatprep.subr.mxu0 0.0
    %672 = vmatpush1.msra.mxu0 %v620
    %673 = vmatprep.subr.mxu0 0.0
    %674 = vmatpush1.msra.mxu0 %v621
    %675 = vmatprep.subr.mxu0 0.0
    %676 = vmatpush1.msra.mxu0 %v622
    %677 = vmatprep.subr.mxu0 0.0
    %678 = vmatpush1.msra.mxu0 %v623
    %679 = vmatprep.subr.mxu0 0.0
    %680 = vmatpush1.msra.mxu0 %v624
    %681 = vmatprep.subr.mxu0 0.0
    %682 = vmatpush1.msra.mxu0 %v625
    %683 = vmatprep.subr.mxu0 0.0
    %684 = vmatpush1.msra.mxu0 %v626
    %685 = vmatprep.subr.mxu0 0.0
    %686 = vmatpush1.msra.mxu0 %v627
    %687 = vmatprep.subr.mxu0 0.0
    %688 = vmatpush1.msra.mxu0 %v628
    %689 = vmatprep.subr.mxu0 0.0
    %690 = vmatpush1.msra.mxu0 %v629
    %691 = vmatprep.subr.mxu0 0.0
    %692 = vmatpush1.msra.mxu0 %v630
    %693 = vmatprep.subr.mxu0 0.0
    %694 = vmatpush1.msra.mxu0 %v631
    %695 = vmatprep.subr.mxu0 0.0
    %696 = vmatpush1.msra.mxu0 %v632
    %697 = vmatprep.subr.mxu0 0.0
    %698 = vmatpush1.msra.mxu0 %v633
    %699 = vmatprep.subr.mxu0 0.0
    %700 = vmatpush1.msra.mxu0 %v634
    %701 = vmatprep.subr.mxu0 0.0
    %702 = vmatpush1.msra.mxu0 %v635
    %703 = vmatprep.subr.mxu0 0.0
    %704 = vmatpush1.msra.mxu0 %v636
    %705 = vmatprep.subr.mxu0 0.0
    %706 = vmatpush1.msra.mxu0 %v637
    %707 = vmatprep.subr.mxu0 0.0
    %708 = vmatpush1.msra.mxu0 %v638
    %709 = vmatprep.subr.mxu0 0.0
    %710 = vmatpush1.msra.mxu0 %v639
    %711 = vmatprep.mubr.f32.mxu0 %v605
    %712 = vmatmul.mubr.f32.gmra.mrb[0].mxu0 %v604
    %v713 = vpop.f32.mrb[0].mxu0
    %v714 = vadd.f32 %v645, %v713
    %v715 = vpop.f32.mrb[0].mxu0
    %716 = vmatprep.mubr.f32.mxu0 %v607
    %717 = vmatmul.mubr.f32.gmra.mrb[0].mxu0 %v606
    %v718 = vpop.f32.mrb[0].mxu0
    %v719 = vadd.f32 %v645, %v718
    %v720 = vpop.f32.mrb[0].mxu0
    %721 = vdwg.mxu0
    %v722 = vmax.f32 %v714, 0.0
    %v723 = vmax.f32 %v719, 0.0
    %v724 = vld [vmem:[#allocation10] sm:$0xff]
    %v725 = vld [vmem:[#allocation10 + $0x8] sm:$0xff]
    %v726 = vld [vmem:[#allocation10 + $0x10] sm:$0xff]
    %v727 = vld [vmem:[#allocation10 + $0x18] sm:$0xff]
    %v728 = vld [vmem:[#allocation10 + $0x20] sm:$0xff]
    %v729 = vld [vmem:[#allocation10 + $0x28] sm:$0xff]
    %v730 = vld [vmem:[#allocation10 + $0x30] sm:$0xff]
    %v731 = vld [vmem:[#allocation10 + $0x38] sm:$0xff]
    %v732 = vld [vmem:[#allocation10 + $0x40] sm:$0xff]
    %v733 = vld [vmem:[#allocation10 + $0x48] sm:$0xff]
    %v734 = vld [vmem:[#allocation10 + $0x50] sm:$0xff]
    %v735 = vld [vmem:[#allocation10 + $0x58] sm:$0xff]
    %v736 = vld [vmem:[#allocation10 + $0x60] sm:$0xff]
    %v737 = vld [vmem:[#allocation10 + $0x68] sm:$0xff]
    %v738 = vld [vmem:[#allocation10 + $0x70] sm:$0xff]
    %v739 = vld [vmem:[#allocation10 + $0x78] sm:$0xff]
    %v740 = vld [vmem:[%s8] sm:$0x1]
    %v742 = vlaneseq
    %v743 = vshrl.u32 %v742, 7
    %v744 = vsub.s32 0, %v743
    %v745 = vrot.slane %v740, %v744
    %747 = vmatprep.subr.mxu0 0.0
    %748 = vmatpush1.msra.mxu0 %v724
    %749 = vmatprep.subr.mxu0 0.0
    %750 = vmatpush1.msra.mxu0 %v725
    %751 = vmatprep.subr.mxu0 0.0
    %752 = vmatpush1.msra.mxu0 %v726
    %753 = vmatprep.subr.mxu0 0.0
    %754 = vmatpush1.msra.mxu0 %v727
    %755 = vmatprep.subr.mxu0 0.0
    %756 = vmatpush1.msra.mxu0 %v728
    %757 = vmatprep.subr.mxu0 0.0
    %758 = vmatpush1.msra.mxu0 %v729
    %759 = vmatprep.subr.mxu0 0.0
    %760 = vmatpush1.msra.mxu0 %v730
    %761 = vmatprep.subr.mxu0 0.0
    %762 = vmatpush1.msra.mxu0 %v731
    %763 = vmatprep.subr.mxu0 0.0
    %764 = vmatpush1.msra.mxu0 %v732
    %765 = vmatprep.subr.mxu0 0.0
    %766 = vmatpush1.msra.mxu0 %v733
    %767 = vmatprep.subr.mxu0 0.0
    %768 = vmatpush1.msra.mxu0 %v734
    %769 = vmatprep.subr.mxu0 0.0
    %770 = vmatpush1.msra.mxu0 %v735
    %771 = vmatprep.subr.mxu0 0.0
    %772 = vmatpush1.msra.mxu0 %v736
    %773 = vmatprep.subr.mxu0 0.0
    %774 = vmatpush1.msra.mxu0 %v737
    %775 = vmatprep.subr.mxu0 0.0
    %776 = vmatpush1.msra.mxu0 %v738
    %777 = vmatprep.subr.mxu0 0.0
    %778 = vmatpush1.msra.mxu0 %v739
    %779 = vmatprep.subr.mxu0 0.0
    %780 = vmatpush1.msra.mxu0 0.0
    %781 = vmatprep.subr.mxu0 0.0
    %782 = vmatpush1.msra.mxu0 0.0
    %783 = vmatprep.subr.mxu0 0.0
    %784 = vmatpush1.msra.mxu0 0.0
    %785 = vmatprep.subr.mxu0 0.0
    %786 = vmatpush1.msra.mxu0 0.0
    %787 = vmatprep.subr.mxu0 0.0
    %788 = vmatpush1.msra.mxu0 0.0
    %789 = vmatprep.subr.mxu0 0.0
    %790 = vmatpush1.msra.mxu0 0.0
    %791 = vmatprep.subr.mxu0 0.0
    %792 = vmatpush1.msra.mxu0 0.0
    %793 = vmatprep.subr.mxu0 0.0
    %794 = vmatpush1.msra.mxu0 0.0
    %795 = vmatprep.subr.mxu0 0.0
    %796 = vmatpush1.msra.mxu0 0.0
    %797 = vmatprep.subr.mxu0 0.0
    %798 = vmatpush1.msra.mxu0 0.0
    %799 = vmatprep.subr.mxu0 0.0
    %800 = vmatpush1.msra.mxu0 0.0
    %801 = vmatprep.subr.mxu0 0.0
    %802 = vmatpush1.msra.mxu0 0.0
    %803 = vmatprep.subr.mxu0 0.0
    %804 = vmatpush1.msra.mxu0 0.0
    %805 = vmatprep.subr.mxu0 0.0
    %806 = vmatpush1.msra.mxu0 0.0
    %807 = vmatprep.subr.mxu0 0.0
    %808 = vmatpush1.msra.mxu0 0.0
    %809 = vmatprep.subr.mxu0 0.0
    %810 = vmatpush1.msra.mxu0 0.0
    %811 = vmatprep.mubr.f32.mxu0 0.0
    %812 = vmatmul.mubr.f32.gmra.mrb[0].mxu0 %v722
    %v813 = vpop.f32.mrb[0].mxu0
    %v814 = vadd.f32 %v745, %v813
    %v815 = vpop.f32.mrb[0].mxu0
    %816 = vmatprep.mubr.f32.mxu0 0.0
    %817 = vmatmul.mubr.f32.gmra.mrb[0].mxu0 %v723
    %v818 = vpop.f32.mrb[0].mxu0
    %v819 = vadd.f32 %v745, %v818
    %v820 = vpop.f32.mrb[0].mxu0
    %821 = vdwg.mxu0
    %v822 = vmax.f32 %v814, 0.0
    %v823 = vmax.f32 %v819, 0.0
    %824 = vst [vmem:[#allocation11] sm:$0xff] %v822
    %825 = vst [vmem:[#allocation11 + $0x8] sm:$0xff] %v823
    // Predicated region
    $region58: #{tpu_custom_call.1} parent=1 // pred_check
      _
    $region59: #{tpu_custom_call.1} parent=1 // pred_check_branch
      %827 = sbr.rel (0) target = $region61
    $region60: #{tpu_custom_call.1} parent=1 // pred_region
      %s829 = ssub.s32 256, 256
      %830 = vsyncadd [#allocation4], %s829
      %s831 = sshll.u32 [#allocation11], 4
      %s832 = int_to_ptr.vmem [resolvable:$true] %s831
      %837 = dma.vmem_to_hbm [thread:$0]  %s832, 256, %s9, [#allocation4], 128, 128, 8
    $region61: #{tpu_custom_call.1} parent=1 // pred_fallthru
      _
    // Predicated region
    $region62: #{tpu_custom_call.1} parent=1 // pred_check
      _
    $region63: #{tpu_custom_call.1} parent=1 // pred_check_branch
      %839 = sbr.rel (0) target = $region65
    $region64: #{tpu_custom_call.1} parent=1 // pred_region
      %840 = dma.done [#allocation4], 256
    $region65: #{tpu_custom_call.1} parent=1 // pred_fallthru
      _
    %841 = vsyncpa [#allocation3], 1
    %842 = vsyncpa [#allocation6], 1
    %843 = vsyncpa [#allocation9], 1
    %844 = vsyncpa [#allocation4], 1

</llo_original>
